<compile_context>
chip_gen: v6e
topology: v6e:2x2x1
jax: 0.10.0
libtpu: 0.0.40
codegen_flags: <defaults>
</compile_context>

<pallas_src>
import jax
import jax.numpy as jnp
from jax.experimental import pallas as pl
from jax.experimental.pallas import tpu as pltpu

LANE = 128


def logreg_kernel(x_ref, w_ref, b_ref, o_ref, acc_ref):
    # x_ref:   (block_m, block_d)   VMEM  batch tile of input features
    # w_ref:   (1, block_d)         VMEM  matching chunk of the weight row
    # b_ref:   (1,)                 SMEM  scalar bias
    # o_ref:   (block_m//128, 128)  VMEM  lane-dense output slab (resident over k)
    # acc_ref: (block_m, 1)         VMEM  f32 logits accumulator (resident over k)
    k = pl.program_id(1)

    @pl.when(k == 0)
    def _init():
        acc_ref[...] = jnp.zeros_like(acc_ref)

    # Stream in whatever dtype the caller provides (f32 or bf16), accumulate f32.
    xv = x_ref[...].astype(jnp.float32)
    wv = w_ref[...].astype(jnp.float32)
    # VPU broadcast-multiply + cross-lane reduce over this D chunk -> (block_m, 1)
    acc_ref[...] += jnp.sum(xv * wv, axis=-1, keepdims=True)

    @pl.when(k == pl.num_programs(1) - 1)
    def _finalize():
        logits = acc_ref[...] + b_ref[0]
        # Numerically stable sigmoid: exp never sees a positive argument.
        z = jnp.exp(-jnp.abs(logits))                     # EUP
        probs = jnp.where(logits >= 0.0, 1.0, z) / (1.0 + z)
        # Layout plumbing: (block_m, 1) -> (block_m//128, 128) full-vreg slab,
        # so the writeback is an unmasked, lane-dense store.
        o_ref[...] = probs.reshape(o_ref.shape).astype(o_ref.dtype)


def logreg_forward(x, w, b, *, block_m=None):
    """sigmoid(x @ w.T + b); x: (B, D), w: (1, D) (nn.Linear layout), b: (1,)."""
    B, D = x.shape
    assert w.shape == (1, D) and b.shape == (1,)
    x_bytes = jnp.dtype(x.dtype).itemsize

    # ---- feature (D) blocking ------------------------------------------------
    # Block D only when it is large AND 128-aligned, so a chunk never reads
    # out-of-bounds lanes (garbage columns would corrupt the accumulation).
    X_TILE_BUDGET = 24 * 1024 * 1024          # double-buffered x tile budget
    if D % LANE == 0 and 2 * LANE * D * x_bytes > X_TILE_BUDGET:
        block_d = 512 if D % 512 == 0 else LANE
    else:
        # TODO(synk): a huge, non-128-aligned D would need an in-kernel masked
        # tail chunk; such shapes are not blocked here.
        block_d = D
    num_k = D // block_d

    # ---- batch (M) tile ------------------------------------------------------
    MAX_BLOCK_M = 1024                        # ~HBM roofline saturation
    if block_m is None:
        by_budget = X_TILE_BUDGET // (2 * block_d * x_bytes)
        block_m = min(MAX_BLOCK_M, max(LANE, (by_budget // LANE) * LANE))
    block_m = min(block_m, pl.cdiv(B, LANE) * LANE)       # don't exceed padded B
    block_m = max(LANE, (block_m // LANE) * LANE)

    num_m = pl.cdiv(B, block_m)
    B_pad = num_m * block_m
    sub_m = block_m // LANE

    # ---- VMEM budget for this tile choice (v5e scoped default is only 16 MiB;
    # v7x physical is 64 MiB, so cap well below it).
    need = (2 * block_m * block_d * x_bytes           # double-buffered x tile
            + block_m * block_d * 4                   # f32 compute headroom
            + 4 * block_d * jnp.dtype(w.dtype).itemsize
            + 2 * block_m * 4                         # output slabs
            + block_m * LANE * 4                      # accumulator scratch (tiled)
            + (2 << 20))                              # slack
    vmem_limit = int(min(max(need, 32 * 1024 * 1024), 56 * 1024 * 1024))

    out = pl.pallas_call(
        logreg_kernel,
        out_shape=jax.ShapeDtypeStruct((B_pad // LANE, LANE), jnp.float32),
        grid=(num_m, num_k),                                  # reduction axis last
        in_specs=[
            pl.BlockSpec((block_m, block_d), lambda i, k: (i, k)),   # x tile
            pl.BlockSpec((1, block_d), lambda i, k: (0, k)),         # weight chunk
            pl.BlockSpec(memory_space=pltpu.MemorySpace.SMEM),       # scalar bias
        ],
        out_specs=pl.BlockSpec((sub_m, LANE), lambda i, k: (i, 0)),  # resident over k
        scratch_shapes=[pltpu.VMEM((block_m, 1), jnp.float32)],      # logits acc
        compiler_params=pltpu.CompilerParams(
            dimension_semantics=("parallel", "arbitrary"),
            vmem_limit_bytes=vmem_limit,
        ),
    )(x, w, b)

    # Free metadata reshape: (B_pad//128, 128) row-major == batch order.
    return out.reshape(B_pad, 1)[:B]


def init_params(key, input_size):
    # Deterministic init mimicking nn.Linear's U(-1/sqrt(fan_in), 1/sqrt(fan_in)).
    kw, kb = jax.random.split(key)
    bound = 1.0 / jnp.sqrt(float(input_size))
    w = jax.random.uniform(kw, (1, input_size), jnp.float32, -bound, bound)
    b = jax.random.uniform(kb, (1,), jnp.float32, -bound, bound)
    return w, b


if __name__ == "__main__":
    key = jax.random.PRNGKey(0)
    batch, input_size = 200, 16          # non-multiple of 128 exercises ragged tail

    k_x, k_p = jax.random.split(key)
    x = jax.random.normal(k_x, (batch, input_size), jnp.float32)
    w, b = init_params(k_p, input_size)

    out = jax.block_until_ready(logreg_forward(x, w, b))

    # Reference (matches torch: sigmoid(Linear(x))).
    ref = jax.nn.sigmoid(x @ w.T + b)
    assert out.shape == (batch, 1)
    assert jnp.allclose(out, ref, atol=1e-5, rtol=1e-5), float(jnp.max(jnp.abs(out - ref)))

    # bf16 streaming path: halves HBM bytes on this memory-bound kernel.
    out_bf16 = jax.block_until_ready(
        logreg_forward(x.astype(jnp.bfloat16), w.astype(jnp.bfloat16), b))
    assert jnp.allclose(out_bf16, ref, atol=2e-2, rtol=2e-2)

    print("KERNEL_OK")
</pallas_src>

<mosaic_0001>
module attributes {stable_mosaic.version = 11 : i64} {
  func.func @logreg_kernel(%arg0: i32, %arg1: i32, %arg2: memref<256x16xf32, #tpu.memory_space<vmem>>, %arg3: memref<1x16xf32, #tpu.memory_space<vmem>>, %arg4: memref<1xf32, #tpu.memory_space<smem>>, %arg5: memref<2x128xf32, #tpu.memory_space<vmem>>, %arg6: memref<256x1xf32, #tpu.memory_space<vmem>>) attributes {dimension_semantics = [#tpu.dimension_semantics<parallel>, #tpu.dimension_semantics<arbitrary>], iteration_bounds = array<i64: 1, 1>, scalar_prefetch = 0 : i64, scratch_operands = 1 : i64, tpu.core_type = #tpu.core_type<tc>, window_params = [{transform_indices = @transform_0, window_bounds = array<i64: 256, 16>}, {transform_indices = @transform_1, window_bounds = array<i64: 1, 16>}, {transform_indices = @transform_2, window_bounds = array<i64: 1>}, {transform_indices = @transform_3, window_bounds = array<i64: 2, 128>}]} {
    %c0_i32 = arith.constant 0 : i32
    %0 = arith.cmpi eq, %arg1, %c0_i32 : i32
    %1 = arith.extui %0 : i1 to i32
    %c0_i32_0 = arith.constant 0 : i32
    %2 = arith.cmpi ne, %1, %c0_i32_0 : i32
    scf.if %2 {
      %cst_10 = arith.constant 0.000000e+00 : f32
      %15 = vector.broadcast %cst_10 : f32 to vector<256x1xf32>
      %c0_11 = arith.constant 0 : index
      %c0_12 = arith.constant 0 : index
      %16 = vector.load %arg6[%c0_11, %c0_12] : memref<256x1xf32, #tpu.memory_space<vmem>>, vector<256x1xf32>
      tpu.vector_store %arg6[%c0_11, %c0_12], %15 {strides = array<i32>} : memref<256x1xf32, #tpu.memory_space<vmem>>, vector<256x1xf32>,
    } else {
    }
    %c0 = arith.constant 0 : index
    %c0_1 = arith.constant 0 : index
    %3 = vector.load %arg2[%c0, %c0_1] : memref<256x16xf32, #tpu.memory_space<vmem>>, vector<256x16xf32>
    %c0_2 = arith.constant 0 : index
    %c0_3 = arith.constant 0 : index
    %4 = vector.load %arg3[%c0_2, %c0_3] : memref<1x16xf32, #tpu.memory_space<vmem>>, vector<1x16xf32>
    %c0_4 = arith.constant 0 : index
    %c0_5 = arith.constant 0 : index
    %5 = vector.load %arg6[%c0_4, %c0_5] : memref<256x1xf32, #tpu.memory_space<vmem>>, vector<256x1xf32>
    %6 = vector.broadcast %4 : vector<1x16xf32> to vector<256x16xf32>
    %7 = arith.mulf %3, %6 : vector<256x16xf32>
    %cst = arith.constant dense<0.000000e+00> : vector<256xf32>
    %8 = vector.multi_reduction <add>, %7, %cst [1] : vector<256x16xf32> to vector<256xf32>
    %9 = vector.shape_cast %8 : vector<256xf32> to vector<256x1xf32>
    %10 = arith.addf %5, %9 : vector<256x1xf32>
    %c0_6 = arith.constant 0 : index
    %c0_7 = arith.constant 0 : index
    %11 = vector.load %arg6[%c0_6, %c0_7] : memref<256x1xf32, #tpu.memory_space<vmem>>, vector<256x1xf32>
    tpu.vector_store %arg6[%c0_6, %c0_7], %10 {strides = array<i32>} : memref<256x1xf32, #tpu.memory_space<vmem>>, vector<256x1xf32>,
    %c0_i32_8 = arith.constant 0 : i32
    %12 = arith.cmpi eq, %arg1, %c0_i32_8 : i32
    %13 = arith.extui %12 : i1 to i32
    %c0_i32_9 = arith.constant 0 : i32
    %14 = arith.cmpi ne, %13, %c0_i32_9 : i32
    scf.if %14 {
      %c0_10 = arith.constant 0 : index
      %c0_11 = arith.constant 0 : index
      %15 = vector.load %arg6[%c0_10, %c0_11] : memref<256x1xf32, #tpu.memory_space<vmem>>, vector<256x1xf32>
      %c0_12 = arith.constant 0 : index
      %16 = memref.load %arg4[%c0_12] : memref<1xf32, #tpu.memory_space<smem>>
      %17 = vector.broadcast %16 : f32 to vector<256x1xf32>
      %18 = arith.addf %15, %17 : vector<256x1xf32>
      %19 = math.absf %18 : vector<256x1xf32>
      %cst_13 = arith.constant 0.000000e+00 : f32
      %20 = vector.broadcast %cst_13 : f32 to vector<256x1xf32>
      %21 = arith.subf %20, %19 : vector<256x1xf32>
      %22 = math.exp %21 : vector<256x1xf32>
      %cst_14 = arith.constant 0.000000e+00 : f32
      %23 = vector.broadcast %cst_14 : f32 to vector<256x1xf32>
      %24 = arith.cmpf oge, %18, %23 : vector<256x1xf32>
      %cst_15 = arith.constant 1.000000e+00 : f32
      %25 = vector.broadcast %cst_15 : f32 to vector<256x1xf32>
      %26 = arith.select %24, %25, %22 : vector<256x1xi1>, vector<256x1xf32>
      %cst_16 = arith.constant 1.000000e+00 : f32
      %27 = vector.broadcast %cst_16 : f32 to vector<256x1xf32>
      %28 = arith.addf %27, %22 : vector<256x1xf32>
      %29 = arith.divf %26, %28 : vector<256x1xf32>
      %30 = vector.shape_cast %29 : vector<256x1xf32> to vector<2x128xf32>
      %c0_17 = arith.constant 0 : index
      %c0_18 = arith.constant 0 : index
      %31 = vector.load %arg5[%c0_17, %c0_18] : memref<2x128xf32, #tpu.memory_space<vmem>>, vector<2x128xf32>
      tpu.vector_store %arg5[%c0_17, %c0_18], %30 {strides = array<i32>} : memref<2x128xf32, #tpu.memory_space<vmem>>, vector<2x128xf32>,
    } else {
    }
    return
  }
  func.func @transform_0(%arg0: i32, %arg1: i32) -> (i32, i32) {
    %c0_i32 = arith.constant 0 : i32
    return %arg0, %arg1 : i32, i32
  }
  func.func @transform_1(%arg0: i32, %arg1: i32) -> (i32, i32) {
    %c0_i32 = arith.constant 0 : i32
    %c0_i32_0 = arith.constant 0 : i32
    return %c0_i32, %arg1 : i32, i32
  }
  func.func @transform_2(%arg0: i32, %arg1: i32) -> i32 {
    %c0_i32 = arith.constant 0 : i32
    %c0_i32_0 = arith.constant 0 : i32
    return %c0_i32 : i32
  }
  func.func @transform_3(%arg0: i32, %arg1: i32) -> (i32, i32) {
    %c0_i32 = arith.constant 0 : i32
    %c0_i32_0 = arith.constant 0 : i32
    return %arg0, %c0_i32 : i32, i32
  }
}

</mosaic_0001>

<llo_original>
// kernel: tpu_custom_call.1
$region0: #{tpu_custom_call.1}
  #allocation0 [shape = 'u32[]', space=smem, size = 0x4, offset = 0x4, fixed_abs, tag = 'smem constant byte address 0x4 - core index']
  #allocation1 [shape = 'u32[144,128]{1,0:T(1,128)}', space=vmem, size = 0x12000, scoped, tag = 'internal scratch']
  #allocation2 [shape = 'f32[256,1]{1,0:T(8,128)}', space=vmem, size = 0x20000, scoped, tag = 'scratch operand']
  #allocation3 [shape = 'f32[1]{0:T(128)S(6)}', space=smem, size = 0x200, scoped, tag = 'scoped memory for tpu_custom_call.1']
  %s0 = inlined_call_operand.vmem [shape: f32[200,16], index: 0, kind: input, shape index: {}]
  %s1 = inlined_call_operand.vmem [shape: f32[1,16], index: 1, kind: input, shape index: {}]
  %s2 = inlined_call_operand.<no memory space> [shape: f32[1], index: 2, kind: input, shape index: {}]
  %s3 = inlined_call_operand.hbm [shape: f32[2,128], index: 3, kind: output, shape index: {}]
  %s4 = sld [smem:[#allocation0]]
  $region30: #{tpu_custom_call.1} parent=0
    _
  %s6 = ssub.s32 1, %s4
  %s7 = scalar_select 0, %s6, %s4
  %8 = sst [smem:[#allocation3]] %s2
  $region1: #{tpu_custom_call.1} parent=0
    #allocation4 [shape = 'u8[1024]{0}', space=vmem, size = 0x400, scoped, tag = 'output window, operand 0, single buffered']
    #allocation5 [shape = 's32[1]{0}', space=sflag, size = 0x4, scoped, tag = 'scoped memory for tpu_custom_call.1']
    %9 = vsyncpa [#allocation5], 0
    // Predicated region
    $region2: #{tpu_custom_call.1} parent=1 // pred_check
      _
    $region3: #{tpu_custom_call.1} parent=1 // pred_check_branch
      %11 = sbr.rel (0) target = $region5
    $region4: #{tpu_custom_call.1} parent=1 // pred_region
      _
    $region5: #{tpu_custom_call.1} parent=1 // pred_fallthru
      _
    // Predicated region
    $region6: #{tpu_custom_call.1} parent=1 // pred_check
      _
    $region7: #{tpu_custom_call.1} parent=1 // pred_check_branch
      %13 = sbr.rel (0) target = $region9
    $region8: #{tpu_custom_call.1} parent=1 // pred_region
      _
    $region9: #{tpu_custom_call.1} parent=1 // pred_fallthru
      _
    // Predicated region
    $region10: #{tpu_custom_call.1} parent=1 // pred_check
      _
    $region11: #{tpu_custom_call.1} parent=1 // pred_check_branch
      %15 = sbr.rel (0) target = $region13
    $region12: #{tpu_custom_call.1} parent=1 // pred_region
      _
    $region13: #{tpu_custom_call.1} parent=1 // pred_fallthru
      _
    %p16 = scmp.eq.s32.totalorder 0, 0
    // Predicated region
    $region14: #{tpu_custom_call.1} parent=1 // pred_check
      %p17 = pneg %p16
    $region15: #{tpu_custom_call.1} parent=1 // pred_check_branch
      %19 = sbr.rel (%p17) target = $region17
    $region16: #{tpu_custom_call.1} parent=1 // pred_region
      %vm20 = vcmask 7168
      %21 = vst.msk [vmem:[#allocation2] sm:$0xff] %vm20, 0.0
      %22 = vst.msk [vmem:[#allocation2 + $0x8] sm:$0xff] %vm20, 0.0
      %23 = vst.msk [vmem:[#allocation2 + $0x10] sm:$0xff] %vm20, 0.0
      %24 = vst.msk [vmem:[#allocation2 + $0x18] sm:$0xff] %vm20, 0.0
      %25 = vst.msk [vmem:[#allocation2 + $0x20] sm:$0xff] %vm20, 0.0
      %26 = vst.msk [vmem:[#allocation2 + $0x28] sm:$0xff] %vm20, 0.0
      %27 = vst.msk [vmem:[#allocation2 + $0x30] sm:$0xff] %vm20, 0.0
      %28 = vst.msk [vmem:[#allocation2 + $0x38] sm:$0xff] %vm20, 0.0
      %29 = vst.msk [vmem:[#allocation2 + $0x40] sm:$0xff] %vm20, 0.0
      %30 = vst.msk [vmem:[#allocation2 + $0x48] sm:$0xff] %vm20, 0.0
      %31 = vst.msk [vmem:[#allocation2 + $0x50] sm:$0xff] %vm20, 0.0
      %32 = vst.msk [vmem:[#allocation2 + $0x58] sm:$0xff] %vm20, 0.0
      %33 = vst.msk [vmem:[#allocation2 + $0x60] sm:$0xff] %vm20, 0.0
      %34 = vst.msk [vmem:[#allocation2 + $0x68] sm:$0xff] %vm20, 0.0
      %35 = vst.msk [vmem:[#allocation2 + $0x70] sm:$0xff] %vm20, 0.0
      %36 = vst.msk [vmem:[#allocation2 + $0x78] sm:$0xff] %vm20, 0.0
      %37 = vst.msk [vmem:[#allocation2 + $0x80] sm:$0xff] %vm20, 0.0
      %38 = vst.msk [vmem:[#allocation2 + $0x88] sm:$0xff] %vm20, 0.0
      %39 = vst.msk [vmem:[#allocation2 + $0x90] sm:$0xff] %vm20, 0.0
      %40 = vst.msk [vmem:[#allocation2 + $0x98] sm:$0xff] %vm20, 0.0
      %41 = vst.msk [vmem:[#allocation2 + $0xa0] sm:$0xff] %vm20, 0.0
      %42 = vst.msk [vmem:[#allocation2 + $0xa8] sm:$0xff] %vm20, 0.0
      %43 = vst.msk [vmem:[#allocation2 + $0xb0] sm:$0xff] %vm20, 0.0
      %44 = vst.msk [vmem:[#allocation2 + $0xb8] sm:$0xff] %vm20, 0.0
      %45 = vst.msk [vmem:[#allocation2 + $0xc0] sm:$0xff] %vm20, 0.0
      %46 = vst.msk [vmem:[#allocation2 + $0xc8] sm:$0xff] %vm20, 0.0
      %47 = vst.msk [vmem:[#allocation2 + $0xd0] sm:$0xff] %vm20, 0.0
      %48 = vst.msk [vmem:[#allocation2 + $0xd8] sm:$0xff] %vm20, 0.0
      %49 = vst.msk [vmem:[#allocation2 + $0xe0] sm:$0xff] %vm20, 0.0
      %50 = vst.msk [vmem:[#allocation2 + $0xe8] sm:$0xff] %vm20, 0.0
      %51 = vst.msk [vmem:[#allocation2 + $0xf0] sm:$0xff] %vm20, 0.0
      %52 = vst.msk [vmem:[#allocation2 + $0xf8] sm:$0xff] %vm20, 0.0
    $region17: #{tpu_custom_call.1} parent=1 // pred_fallthru
      _
    %v53 = vld [vmem:[%s0] sm:$0xff]
    %v54 = vld [vmem:[%s0 + $0x8] sm:$0xff]
    %v55 = vld [vmem:[%s0 + $0x10] sm:$0xff]
    %v56 = vld [vmem:[%s0 + $0x18] sm:$0xff]
    %v57 = vld [vmem:[%s0 + $0x20] sm:$0xff]
    %v58 = vld [vmem:[%s0 + $0x28] sm:$0xff]
    %v59 = vld [vmem:[%s0 + $0x30] sm:$0xff]
    %v60 = vld [vmem:[%s0 + $0x38] sm:$0xff]
    %v61 = vld [vmem:[%s0 + $0x40] sm:$0xff]
    %v62 = vld [vmem:[%s0 + $0x48] sm:$0xff]
    %v63 = vld [vmem:[%s0 + $0x50] sm:$0xff]
    %v64 = vld [vmem:[%s0 + $0x58] sm:$0xff]
    %v65 = vld [vmem:[%s0 + $0x60] sm:$0xff]
    %v66 = vld [vmem:[%s0 + $0x68] sm:$0xff]
    %v67 = vld [vmem:[%s0 + $0x70] sm:$0xff]
    %v68 = vld [vmem:[%s0 + $0x78] sm:$0xff]
    %v69 = vld [vmem:[%s0 + $0x80] sm:$0xff]
    %v70 = vld [vmem:[%s0 + $0x88] sm:$0xff]
    %v71 = vld [vmem:[%s0 + $0x90] sm:$0xff]
    %v72 = vld [vmem:[%s0 + $0x98] sm:$0xff]
    %v73 = vld [vmem:[%s0 + $0xa0] sm:$0xff]
    %v74 = vld [vmem:[%s0 + $0xa8] sm:$0xff]
    %v75 = vld [vmem:[%s0 + $0xb0] sm:$0xff]
    %v76 = vld [vmem:[%s0 + $0xb8] sm:$0xff]
    %v77 = vld [vmem:[%s0 + $0xc0] sm:$0xff]
    %v78 = vld [vmem:[%s0 + $0xc8] sm:$0xff]
    %v79 = vld [vmem:[%s0 + $0xd0] sm:$0xff]
    %v80 = vld [vmem:[%s0 + $0xd8] sm:$0xff]
    %v81 = vld [vmem:[%s0 + $0xe0] sm:$0xff]
    %v82 = vld [vmem:[%s0 + $0xe8] sm:$0xff]
    %v83 = vld [vmem:[%s0 + $0xf0] sm:$0xff]
    %v84 = vld [vmem:[%s0 + $0xf8] sm:$0xff]
    %v85 = vld [vmem:[%s1] sm:$0x1]
    %v86 = vld [vmem:[#allocation2] sm:$0xff]
    %v87 = vld [vmem:[#allocation2 + $0x8] sm:$0xff]
    %v88 = vld [vmem:[#allocation2 + $0x10] sm:$0xff]
    %v89 = vld [vmem:[#allocation2 + $0x18] sm:$0xff]
    %v90 = vld [vmem:[#allocation2 + $0x20] sm:$0xff]
    %v91 = vld [vmem:[#allocation2 + $0x28] sm:$0xff]
    %v92 = vld [vmem:[#allocation2 + $0x30] sm:$0xff]
    %v93 = vld [vmem:[#allocation2 + $0x38] sm:$0xff]
    %v94 = vld [vmem:[#allocation2 + $0x40] sm:$0xff]
    %v95 = vld [vmem:[#allocation2 + $0x48] sm:$0xff]
    %v96 = vld [vmem:[#allocation2 + $0x50] sm:$0xff]
    %v97 = vld [vmem:[#allocation2 + $0x58] sm:$0xff]
    %v98 = vld [vmem:[#allocation2 + $0x60] sm:$0xff]
    %v99 = vld [vmem:[#allocation2 + $0x68] sm:$0xff]
    %v100 = vld [vmem:[#allocation2 + $0x70] sm:$0xff]
    %v101 = vld [vmem:[#allocation2 + $0x78] sm:$0xff]
    %v102 = vld [vmem:[#allocation2 + $0x80] sm:$0xff]
    %v103 = vld [vmem:[#allocation2 + $0x88] sm:$0xff]
    %v104 = vld [vmem:[#allocation2 + $0x90] sm:$0xff]
    %v105 = vld [vmem:[#allocation2 + $0x98] sm:$0xff]
    %v106 = vld [vmem:[#allocation2 + $0xa0] sm:$0xff]
    %v107 = vld [vmem:[#allocation2 + $0xa8] sm:$0xff]
    %v108 = vld [vmem:[#allocation2 + $0xb0] sm:$0xff]
    %v109 = vld [vmem:[#allocation2 + $0xb8] sm:$0xff]
    %v110 = vld [vmem:[#allocation2 + $0xc0] sm:$0xff]
    %v111 = vld [vmem:[#allocation2 + $0xc8] sm:$0xff]
    %v112 = vld [vmem:[#allocation2 + $0xd0] sm:$0xff]
    %v113 = vld [vmem:[#allocation2 + $0xd8] sm:$0xff]
    %v114 = vld [vmem:[#allocation2 + $0xe0] sm:$0xff]
    %v115 = vld [vmem:[#allocation2 + $0xe8] sm:$0xff]
    %v116 = vld [vmem:[#allocation2 + $0xf0] sm:$0xff]
    %v117 = vld [vmem:[#allocation2 + $0xf8] sm:$0xff]
    %v119 = vlaneseq
    %v120 = vshrl.u32 %v119, 7
    %v121 = vsub.s32 0, %v120
    %v122 = vrot.slane %v85, %v121
    %v124 = vmul.f32 %v53, %v122
    %v125 = vmul.f32 %v54, %v122
    %v126 = vmul.f32 %v55, %v122
    %v127 = vmul.f32 %v56, %v122
    %v128 = vmul.f32 %v57, %v122
    %v129 = vmul.f32 %v58, %v122
    %v130 = vmul.f32 %v59, %v122
    %v131 = vmul.f32 %v60, %v122
    %v132 = vmul.f32 %v61, %v122
    %v133 = vmul.f32 %v62, %v122
    %v134 = vmul.f32 %v63, %v122
    %v135 = vmul.f32 %v64, %v122
    %v136 = vmul.f32 %v65, %v122
    %v137 = vmul.f32 %v66, %v122
    %v138 = vmul.f32 %v67, %v122
    %v139 = vmul.f32 %v68, %v122
    %v140 = vmul.f32 %v69, %v122
    %v141 = vmul.f32 %v70, %v122
    %v142 = vmul.f32 %v71, %v122
    %v143 = vmul.f32 %v72, %v122
    %v144 = vmul.f32 %v73, %v122
    %v145 = vmul.f32 %v74, %v122
    %v146 = vmul.f32 %v75, %v122
    %v147 = vmul.f32 %v76, %v122
    %v148 = vmul.f32 %v77, %v122
    %v149 = vmul.f32 %v78, %v122
    %v150 = vmul.f32 %v79, %v122
    %v151 = vmul.f32 %v80, %v122
    %v152 = vmul.f32 %v81, %v122
    %v153 = vmul.f32 %v82, %v122
    %v154 = vmul.f32 %v83, %v122
    %v155 = vmul.f32 %v84, %v122
    %vm156 = vcmask 130048
    %v157 = vsel %vm156, %v124, 0.0
    %158 = vadd.xlane.f32.xlu0 %v157
    %v159 = vpop.xlane.xlu0 %158
    %v160 = vsel %vm156, %v125, 0.0
    %161 = vadd.xlane.f32.xlu0 %v160
    %v162 = vpop.xlane.xlu0 %161
    %v163 = vsel %vm156, %v126, 0.0
    %164 = vadd.xlane.f32.xlu0 %v163
    %v165 = vpop.xlane.xlu0 %164
    %v166 = vsel %vm156, %v127, 0.0
    %167 = vadd.xlane.f32.xlu0 %v166
    %v168 = vpop.xlane.xlu0 %167
    %v169 = vsel %vm156, %v128, 0.0
    %170 = vadd.xlane.f32.xlu0 %v169
    %v171 = vpop.xlane.xlu0 %170
    %v172 = vsel %vm156, %v129, 0.0
    %173 = vadd.xlane.f32.xlu0 %v172
    %v174 = vpop.xlane.xlu0 %173
    %v175 = vsel %vm156, %v130, 0.0
    %176 = vadd.xlane.f32.xlu0 %v175
    %v177 = vpop.xlane.xlu0 %176
    %v178 = vsel %vm156, %v131, 0.0
    %179 = vadd.xlane.f32.xlu0 %v178
    %v180 = vpop.xlane.xlu0 %179
    %v181 = vsel %vm156, %v132, 0.0
    %182 = vadd.xlane.f32.xlu0 %v181
    %v183 = vpop.xlane.xlu0 %182
    %v184 = vsel %vm156, %v133, 0.0
    %185 = vadd.xlane.f32.xlu0 %v184
    %v186 = vpop.xlane.xlu0 %185
    %v187 = vsel %vm156, %v134, 0.0
    %188 = vadd.xlane.f32.xlu0 %v187
    %v189 = vpop.xlane.xlu0 %188
    %v190 = vsel %vm156, %v135, 0.0
    %191 = vadd.xlane.f32.xlu0 %v190
    %v192 = vpop.xlane.xlu0 %191
    %v193 = vsel %vm156, %v136, 0.0
    %194 = vadd.xlane.f32.xlu0 %v193
    %v195 = vpop.xlane.xlu0 %194
    %v196 = vsel %vm156, %v137, 0.0
    %197 = vadd.xlane.f32.xlu0 %v196
    %v198 = vpop.xlane.xlu0 %197
    %v199 = vsel %vm156, %v138, 0.0
    %200 = vadd.xlane.f32.xlu0 %v199
    %v201 = vpop.xlane.xlu0 %200
    %v202 = vsel %vm156, %v139, 0.0
    %203 = vadd.xlane.f32.xlu0 %v202
    %v204 = vpop.xlane.xlu0 %203
    %v205 = vsel %vm156, %v140, 0.0
    %206 = vadd.xlane.f32.xlu0 %v205
    %v207 = vpop.xlane.xlu0 %206
    %v208 = vsel %vm156, %v141, 0.0
    %209 = vadd.xlane.f32.xlu0 %v208
    %v210 = vpop.xlane.xlu0 %209
    %v211 = vsel %vm156, %v142, 0.0
    %212 = vadd.xlane.f32.xlu0 %v211
    %v213 = vpop.xlane.xlu0 %212
    %v214 = vsel %vm156, %v143, 0.0
    %215 = vadd.xlane.f32.xlu0 %v214
    %v216 = vpop.xlane.xlu0 %215
    %v217 = vsel %vm156, %v144, 0.0
    %218 = vadd.xlane.f32.xlu0 %v217
    %v219 = vpop.xlane.xlu0 %218
    %v220 = vsel %vm156, %v145, 0.0
    %221 = vadd.xlane.f32.xlu0 %v220
    %v222 = vpop.xlane.xlu0 %221
    %v223 = vsel %vm156, %v146, 0.0
    %224 = vadd.xlane.f32.xlu0 %v223
    %v225 = vpop.xlane.xlu0 %224
    %v226 = vsel %vm156, %v147, 0.0
    %227 = vadd.xlane.f32.xlu0 %v226
    %v228 = vpop.xlane.xlu0 %227
    %v229 = vsel %vm156, %v148, 0.0
    %230 = vadd.xlane.f32.xlu0 %v229
    %v231 = vpop.xlane.xlu0 %230
    %v232 = vsel %vm156, %v149, 0.0
    %233 = vadd.xlane.f32.xlu0 %v232
    %v234 = vpop.xlane.xlu0 %233
    %v235 = vsel %vm156, %v150, 0.0
    %236 = vadd.xlane.f32.xlu0 %v235
    %v237 = vpop.xlane.xlu0 %236
    %v238 = vsel %vm156, %v151, 0.0
    %239 = vadd.xlane.f32.xlu0 %v238
    %v240 = vpop.xlane.xlu0 %239
    %v241 = vsel %vm156, %v152, 0.0
    %242 = vadd.xlane.f32.xlu0 %v241
    %v243 = vpop.xlane.xlu0 %242
    %v244 = vsel %vm156, %v153, 0.0
    %245 = vadd.xlane.f32.xlu0 %v244
    %v246 = vpop.xlane.xlu0 %245
    %v247 = vsel %vm156, %v154, 0.0
    %248 = vadd.xlane.f32.xlu0 %v247
    %v249 = vpop.xlane.xlu0 %248
    %v250 = vsel %vm156, %v155, 0.0
    %251 = vadd.xlane.f32.xlu0 %v250
    %v252 = vpop.xlane.xlu0 %251
    %v253 = vadd.f32 %v86, %v159
    %v254 = vadd.f32 %v87, %v162
    %v255 = vadd.f32 %v88, %v165
    %v256 = vadd.f32 %v89, %v168
    %v257 = vadd.f32 %v90, %v171
    %v258 = vadd.f32 %v91, %v174
    %v259 = vadd.f32 %v92, %v177
    %v260 = vadd.f32 %v93, %v180
    %v261 = vadd.f32 %v94, %v183
    %v262 = vadd.f32 %v95, %v186
    %v263 = vadd.f32 %v96, %v189
    %v264 = vadd.f32 %v97, %v192
    %v265 = vadd.f32 %v98, %v195
    %v266 = vadd.f32 %v99, %v198
    %v267 = vadd.f32 %v100, %v201
    %v268 = vadd.f32 %v101, %v204
    %v269 = vadd.f32 %v102, %v207
    %v270 = vadd.f32 %v103, %v210
    %v271 = vadd.f32 %v104, %v213
    %v272 = vadd.f32 %v105, %v216
    %v273 = vadd.f32 %v106, %v219
    %v274 = vadd.f32 %v107, %v222
    %v275 = vadd.f32 %v108, %v225
    %v276 = vadd.f32 %v109, %v228
    %v277 = vadd.f32 %v110, %v231
    %v278 = vadd.f32 %v111, %v234
    %v279 = vadd.f32 %v112, %v237
    %v280 = vadd.f32 %v113, %v240
    %v281 = vadd.f32 %v114, %v243
    %v282 = vadd.f32 %v115, %v246
    %v283 = vadd.f32 %v116, %v249
    %v284 = vadd.f32 %v117, %v252
    %vm285 = vcmask 7168
    %286 = vst.msk [vmem:[#allocation2] sm:$0xff] %vm285, %v253
    %287 = vst.msk [vmem:[#allocation2 + $0x8] sm:$0xff] %vm285, %v254
    %288 = vst.msk [vmem:[#allocation2 + $0x10] sm:$0xff] %vm285, %v255
    %289 = vst.msk [vmem:[#allocation2 + $0x18] sm:$0xff] %vm285, %v256
    %290 = vst.msk [vmem:[#allocation2 + $0x20] sm:$0xff] %vm285, %v257
    %291 = vst.msk [vmem:[#allocation2 + $0x28] sm:$0xff] %vm285, %v258
    %292 = vst.msk [vmem:[#allocation2 + $0x30] sm:$0xff] %vm285, %v259
    %293 = vst.msk [vmem:[#allocation2 + $0x38] sm:$0xff] %vm285, %v260
    %294 = vst.msk [vmem:[#allocation2 + $0x40] sm:$0xff] %vm285, %v261
    %295 = vst.msk [vmem:[#allocation2 + $0x48] sm:$0xff] %vm285, %v262
    %296 = vst.msk [vmem:[#allocation2 + $0x50] sm:$0xff] %vm285, %v263
    %297 = vst.msk [vmem:[#allocation2 + $0x58] sm:$0xff] %vm285, %v264
    %298 = vst.msk [vmem:[#allocation2 + $0x60] sm:$0xff] %vm285, %v265
    %299 = vst.msk [vmem:[#allocation2 + $0x68] sm:$0xff] %vm285, %v266
    %300 = vst.msk [vmem:[#allocation2 + $0x70] sm:$0xff] %vm285, %v267
    %301 = vst.msk [vmem:[#allocation2 + $0x78] sm:$0xff] %vm285, %v268
    %302 = vst.msk [vmem:[#allocation2 + $0x80] sm:$0xff] %vm285, %v269
    %303 = vst.msk [vmem:[#allocation2 + $0x88] sm:$0xff] %vm285, %v270
    %304 = vst.msk [vmem:[#allocation2 + $0x90] sm:$0xff] %vm285, %v271
    %305 = vst.msk [vmem:[#allocation2 + $0x98] sm:$0xff] %vm285, %v272
    %306 = vst.msk [vmem:[#allocation2 + $0xa0] sm:$0xff] %vm285, %v273
    %307 = vst.msk [vmem:[#allocation2 + $0xa8] sm:$0xff] %vm285, %v274
    %308 = vst.msk [vmem:[#allocation2 + $0xb0] sm:$0xff] %vm285, %v275
    %309 = vst.msk [vmem:[#allocation2 + $0xb8] sm:$0xff] %vm285, %v276
    %310 = vst.msk [vmem:[#allocation2 + $0xc0] sm:$0xff] %vm285, %v277
    %311 = vst.msk [vmem:[#allocation2 + $0xc8] sm:$0xff] %vm285, %v278
    %312 = vst.msk [vmem:[#allocation2 + $0xd0] sm:$0xff] %vm285, %v279
    %313 = vst.msk [vmem:[#allocation2 + $0xd8] sm:$0xff] %vm285, %v280
    %314 = vst.msk [vmem:[#allocation2 + $0xe0] sm:$0xff] %vm285, %v281
    %315 = vst.msk [vmem:[#allocation2 + $0xe8] sm:$0xff] %vm285, %v282
    %316 = vst.msk [vmem:[#allocation2 + $0xf0] sm:$0xff] %vm285, %v283
    %317 = vst.msk [vmem:[#allocation2 + $0xf8] sm:$0xff] %vm285, %v284
    // Predicated region
    $region18: #{tpu_custom_call.1} parent=1 // pred_check
      %p318 = pneg %p16
    $region19: #{tpu_custom_call.1} parent=1 // pred_check_branch
      %320 = sbr.rel (%p318) target = $region21
    $region20: #{tpu_custom_call.1} parent=1 // pred_region
      %v321 = vld [vmem:[#allocation2] sm:$0xff]
      %v322 = vld [vmem:[#allocation2 + $0x8] sm:$0xff]
      %v323 = vld [vmem:[#allocation2 + $0x10] sm:$0xff]
      %v324 = vld [vmem:[#allocation2 + $0x18] sm:$0xff]
      %v325 = vld [vmem:[#allocation2 + $0x20] sm:$0xff]
      %v326 = vld [vmem:[#allocation2 + $0x28] sm:$0xff]
      %v327 = vld [vmem:[#allocation2 + $0x30] sm:$0xff]
      %v328 = vld [vmem:[#allocation2 + $0x38] sm:$0xff]
      %v329 = vld [vmem:[#allocation2 + $0x40] sm:$0xff]
      %v330 = vld [vmem:[#allocation2 + $0x48] sm:$0xff]
      %v331 = vld [vmem:[#allocation2 + $0x50] sm:$0xff]
      %v332 = vld [vmem:[#allocation2 + $0x58] sm:$0xff]
      %v333 = vld [vmem:[#allocation2 + $0x60] sm:$0xff]
      %v334 = vld [vmem:[#allocation2 + $0x68] sm:$0xff]
      %v335 = vld [vmem:[#allocation2 + $0x70] sm:$0xff]
      %v336 = vld [vmem:[#allocation2 + $0x78] sm:$0xff]
      %v337 = vld [vmem:[#allocation2 + $0x80] sm:$0xff]
      %v338 = vld [vmem:[#allocation2 + $0x88] sm:$0xff]
      %v339 = vld [vmem:[#allocation2 + $0x90] sm:$0xff]
      %v340 = vld [vmem:[#allocation2 + $0x98] sm:$0xff]
      %v341 = vld [vmem:[#allocation2 + $0xa0] sm:$0xff]
      %v342 = vld [vmem:[#allocation2 + $0xa8] sm:$0xff]
      %v343 = vld [vmem:[#allocation2 + $0xb0] sm:$0xff]
      %v344 = vld [vmem:[#allocation2 + $0xb8] sm:$0xff]
      %v345 = vld [vmem:[#allocation2 + $0xc0] sm:$0xff]
      %v346 = vld [vmem:[#allocation2 + $0xc8] sm:$0xff]
      %v347 = vld [vmem:[#allocation2 + $0xd0] sm:$0xff]
      %v348 = vld [vmem:[#allocation2 + $0xd8] sm:$0xff]
      %v349 = vld [vmem:[#allocation2 + $0xe0] sm:$0xff]
      %v350 = vld [vmem:[#allocation2 + $0xe8] sm:$0xff]
      %v351 = vld [vmem:[#allocation2 + $0xf0] sm:$0xff]
      %v352 = vld [vmem:[#allocation2 + $0xf8] sm:$0xff]
      %s353 = sld [smem:[#allocation3]]
      %v354 = vstv %s353
      %v355 = vadd.f32 %v321, %v354
      %v356 = vadd.f32 %v322, %v354
      %v357 = vadd.f32 %v323, %v354
      %v358 = vadd.f32 %v324, %v354
      %v359 = vadd.f32 %v325, %v354
      %v360 = vadd.f32 %v326, %v354
      %v361 = vadd.f32 %v327, %v354
      %v362 = vadd.f32 %v328, %v354
      %v363 = vadd.f32 %v329, %v354
      %v364 = vadd.f32 %v330, %v354
      %v365 = vadd.f32 %v331, %v354
      %v366 = vadd.f32 %v332, %v354
      %v367 = vadd.f32 %v333, %v354
      %v368 = vadd.f32 %v334, %v354
      %v369 = vadd.f32 %v335, %v354
      %v370 = vadd.f32 %v336, %v354
      %v371 = vadd.f32 %v337, %v354
      %v372 = vadd.f32 %v338, %v354
      %v373 = vadd.f32 %v339, %v354
      %v374 = vadd.f32 %v340, %v354
      %v375 = vadd.f32 %v341, %v354
      %v376 = vadd.f32 %v342, %v354
      %v377 = vadd.f32 %v343, %v354
      %v378 = vadd.f32 %v344, %v354
      %v379 = vadd.f32 %v345, %v354
      %v380 = vadd.f32 %v346, %v354
      %v381 = vadd.f32 %v347, %v354
      %v382 = vadd.f32 %v348, %v354
      %v383 = vadd.f32 %v349, %v354
      %v384 = vadd.f32 %v350, %v354
      %v385 = vadd.f32 %v351, %v354
      %v386 = vadd.f32 %v352, %v354
      %v387 = vand.u32 2147483647, %v355
      %v388 = vand.u32 2147483647, %v356
      %v389 = vand.u32 2147483647, %v357
      %v390 = vand.u32 2147483647, %v358
      %v391 = vand.u32 2147483647, %v359
      %v392 = vand.u32 2147483647, %v360
      %v393 = vand.u32 2147483647, %v361
      %v394 = vand.u32 2147483647, %v362
      %v395 = vand.u32 2147483647, %v363
      %v396 = vand.u32 2147483647, %v364
      %v397 = vand.u32 2147483647, %v365
      %v398 = vand.u32 2147483647, %v366
      %v399 = vand.u32 2147483647, %v367
      %v400 = vand.u32 2147483647, %v368
      %v401 = vand.u32 2147483647, %v369
      %v402 = vand.u32 2147483647, %v370
      %v403 = vand.u32 2147483647, %v371
      %v404 = vand.u32 2147483647, %v372
      %v405 = vand.u32 2147483647, %v373
      %v406 = vand.u32 2147483647, %v374
      %v407 = vand.u32 2147483647, %v375
      %v408 = vand.u32 2147483647, %v376
      %v409 = vand.u32 2147483647, %v377
      %v410 = vand.u32 2147483647, %v378
      %v411 = vand.u32 2147483647, %v379
      %v412 = vand.u32 2147483647, %v380
      %v413 = vand.u32 2147483647, %v381
      %v414 = vand.u32 2147483647, %v382
      %v415 = vand.u32 2147483647, %v383
      %v416 = vand.u32 2147483647, %v384
      %v417 = vand.u32 2147483647, %v385
      %v418 = vand.u32 2147483647, %v386
      %v419 = vsub.f32 0.0, %v387
      %v420 = vsub.f32 0.0, %v388
      %v421 = vsub.f32 0.0, %v389
      %v422 = vsub.f32 0.0, %v390
      %v423 = vsub.f32 0.0, %v391
      %v424 = vsub.f32 0.0, %v392
      %v425 = vsub.f32 0.0, %v393
      %v426 = vsub.f32 0.0, %v394
      %v427 = vsub.f32 0.0, %v395
      %v428 = vsub.f32 0.0, %v396
      %v429 = vsub.f32 0.0, %v397
      %v430 = vsub.f32 0.0, %v398
      %v431 = vsub.f32 0.0, %v399
      %v432 = vsub.f32 0.0, %v400
      %v433 = vsub.f32 0.0, %v401
      %v434 = vsub.f32 0.0, %v402
      %v435 = vsub.f32 0.0, %v403
      %v436 = vsub.f32 0.0, %v404
      %v437 = vsub.f32 0.0, %v405
      %v438 = vsub.f32 0.0, %v406
      %v439 = vsub.f32 0.0, %v407
      %v440 = vsub.f32 0.0, %v408
      %v441 = vsub.f32 0.0, %v409
      %v442 = vsub.f32 0.0, %v410
      %v443 = vsub.f32 0.0, %v411
      %v444 = vsub.f32 0.0, %v412
      %v445 = vsub.f32 0.0, %v413
      %v446 = vsub.f32 0.0, %v414
      %v447 = vsub.f32 0.0, %v415
      %v448 = vsub.f32 0.0, %v416
      %v449 = vsub.f32 0.0, %v417
      %v450 = vsub.f32 0.0, %v418
      %v451 = vmul.f32 %v419, 1.442695
      %v452 = vpow.pop %v451
      %v453 = vmul.f32 %v420, 1.442695
      %v454 = vpow.pop %v453
      %v455 = vmul.f32 %v421, 1.442695
      %v456 = vpow.pop %v455
      %v457 = vmul.f32 %v422, 1.442695
      %v458 = vpow.pop %v457
      %v459 = vmul.f32 %v423, 1.442695
      %v460 = vpow.pop %v459
      %v461 = vmul.f32 %v424, 1.442695
      %v462 = vpow.pop %v461
      %v463 = vmul.f32 %v425, 1.442695
      %v464 = vpow.pop %v463
      %v465 = vmul.f32 %v426, 1.442695
      %v466 = vpow.pop %v465
      %v467 = vmul.f32 %v427, 1.442695
      %v468 = vpow.pop %v467
      %v469 = vmul.f32 %v428, 1.442695
      %v470 = vpow.pop %v469
      %v471 = vmul.f32 %v429, 1.442695
      %v472 = vpow.pop %v471
      %v473 = vmul.f32 %v430, 1.442695
      %v474 = vpow.pop %v473
      %v475 = vmul.f32 %v431, 1.442695
      %v476 = vpow.pop %v475
      %v477 = vmul.f32 %v432, 1.442695
      %v478 = vpow.pop %v477
      %v479 = vmul.f32 %v433, 1.442695
      %v480 = vpow.pop %v479
      %v481 = vmul.f32 %v434, 1.442695
      %v482 = vpow.pop %v481
      %v483 = vmul.f32 %v435, 1.442695
      %v484 = vpow.pop %v483
      %v485 = vmul.f32 %v436, 1.442695
      %v486 = vpow.pop %v485
      %v487 = vmul.f32 %v437, 1.442695
      %v488 = vpow.pop %v487
      %v489 = vmul.f32 %v438, 1.442695
      %v490 = vpow.pop %v489
      %v491 = vmul.f32 %v439, 1.442695
      %v492 = vpow.pop %v491
      %v493 = vmul.f32 %v440, 1.442695
      %v494 = vpow.pop %v493
      %v495 = vmul.f32 %v441, 1.442695
      %v496 = vpow.pop %v495
      %v497 = vmul.f32 %v442, 1.442695
      %v498 = vpow.pop %v497
      %v499 = vmul.f32 %v443, 1.442695
      %v500 = vpow.pop %v499
      %v501 = vmul.f32 %v444, 1.442695
      %v502 = vpow.pop %v501
      %v503 = vmul.f32 %v445, 1.442695
      %v504 = vpow.pop %v503
      %v505 = vmul.f32 %v446, 1.442695
      %v506 = vpow.pop %v505
      %v507 = vmul.f32 %v447, 1.442695
      %v508 = vpow.pop %v507
      %v509 = vmul.f32 %v448, 1.442695
      %v510 = vpow.pop %v509
      %v511 = vmul.f32 %v449, 1.442695
      %v512 = vpow.pop %v511
      %v513 = vmul.f32 %v450, 1.442695
      %v514 = vpow.pop %v513
      %vm515 = vcmp.ge.f32.partialorder %v355, 0.0
      %vm516 = vcmp.ge.f32.partialorder %v356, 0.0
      %vm517 = vcmp.ge.f32.partialorder %v357, 0.0
      %vm518 = vcmp.ge.f32.partialorder %v358, 0.0
      %vm519 = vcmp.ge.f32.partialorder %v359, 0.0
      %vm520 = vcmp.ge.f32.partialorder %v360, 0.0
      %vm521 = vcmp.ge.f32.partialorder %v361, 0.0
      %vm522 = vcmp.ge.f32.partialorder %v362, 0.0
      %vm523 = vcmp.ge.f32.partialorder %v363, 0.0
      %vm524 = vcmp.ge.f32.partialorder %v364, 0.0
      %vm525 = vcmp.ge.f32.partialorder %v365, 0.0
      %vm526 = vcmp.ge.f32.partialorder %v366, 0.0
      %vm527 = vcmp.ge.f32.partialorder %v367, 0.0
      %vm528 = vcmp.ge.f32.partialorder %v368, 0.0
      %vm529 = vcmp.ge.f32.partialorder %v369, 0.0
      %vm530 = vcmp.ge.f32.partialorder %v370, 0.0
      %vm531 = vcmp.ge.f32.partialorder %v371, 0.0
      %vm532 = vcmp.ge.f32.partialorder %v372, 0.0
      %vm533 = vcmp.ge.f32.partialorder %v373, 0.0
      %vm534 = vcmp.ge.f32.partialorder %v374, 0.0
      %vm535 = vcmp.ge.f32.partialorder %v375, 0.0
      %vm536 = vcmp.ge.f32.partialorder %v376, 0.0
      %vm537 = vcmp.ge.f32.partialorder %v377, 0.0
      %vm538 = vcmp.ge.f32.partialorder %v378, 0.0
      %vm539 = vcmp.ge.f32.partialorder %v379, 0.0
      %vm540 = vcmp.ge.f32.partialorder %v380, 0.0
      %vm541 = vcmp.ge.f32.partialorder %v381, 0.0
      %vm542 = vcmp.ge.f32.partialorder %v382, 0.0
      %vm543 = vcmp.ge.f32.partialorder %v383, 0.0
      %vm544 = vcmp.ge.f32.partialorder %v384, 0.0
      %vm545 = vcmp.ge.f32.partialorder %v385, 0.0
      %vm546 = vcmp.ge.f32.partialorder %v386, 0.0
      %v547 = vsel %vm515, 1.0, %v452
      %v548 = vsel %vm516, 1.0, %v454
      %v549 = vsel %vm517, 1.0, %v456
      %v550 = vsel %vm518, 1.0, %v458
      %v551 = vsel %vm519, 1.0, %v460
      %v552 = vsel %vm520, 1.0, %v462
      %v553 = vsel %vm521, 1.0, %v464
      %v554 = vsel %vm522, 1.0, %v466
      %v555 = vsel %vm523, 1.0, %v468
      %v556 = vsel %vm524, 1.0, %v470
      %v557 = vsel %vm525, 1.0, %v472
      %v558 = vsel %vm526, 1.0, %v474
      %v559 = vsel %vm527, 1.0, %v476
      %v560 = vsel %vm528, 1.0, %v478
      %v561 = vsel %vm529, 1.0, %v480
      %v562 = vsel %vm530, 1.0, %v482
      %v563 = vsel %vm531, 1.0, %v484
      %v564 = vsel %vm532, 1.0, %v486
      %v565 = vsel %vm533, 1.0, %v488
      %v566 = vsel %vm534, 1.0, %v490
      %v567 = vsel %vm535, 1.0, %v492
      %v568 = vsel %vm536, 1.0, %v494
      %v569 = vsel %vm537, 1.0, %v496
      %v570 = vsel %vm538, 1.0, %v498
      %v571 = vsel %vm539, 1.0, %v500
      %v572 = vsel %vm540, 1.0, %v502
      %v573 = vsel %vm541, 1.0, %v504
      %v574 = vsel %vm542, 1.0, %v506
      %v575 = vsel %vm543, 1.0, %v508
      %v576 = vsel %vm544, 1.0, %v510
      %v577 = vsel %vm545, 1.0, %v512
      %v578 = vsel %vm546, 1.0, %v514
      %v579 = vadd.f32 %v452, 1.0
      %v580 = vadd.f32 %v454, 1.0
      %v581 = vadd.f32 %v456, 1.0
      %v582 = vadd.f32 %v458, 1.0
      %v583 = vadd.f32 %v460, 1.0
      %v584 = vadd.f32 %v462, 1.0
      %v585 = vadd.f32 %v464, 1.0
      %v586 = vadd.f32 %v466, 1.0
      %v587 = vadd.f32 %v468, 1.0
      %v588 = vadd.f32 %v470, 1.0
      %v589 = vadd.f32 %v472, 1.0
      %v590 = vadd.f32 %v474, 1.0
      %v591 = vadd.f32 %v476, 1.0
      %v592 = vadd.f32 %v478, 1.0
      %v593 = vadd.f32 %v480, 1.0
      %v594 = vadd.f32 %v482, 1.0
      %v595 = vadd.f32 %v484, 1.0
      %v596 = vadd.f32 %v486, 1.0
      %v597 = vadd.f32 %v488, 1.0
      %v598 = vadd.f32 %v490, 1.0
      %v599 = vadd.f32 %v492, 1.0
      %v600 = vadd.f32 %v494, 1.0
      %v601 = vadd.f32 %v496, 1.0
      %v602 = vadd.f32 %v498, 1.0
      %v603 = vadd.f32 %v500, 1.0
      %v604 = vadd.f32 %v502, 1.0
      %v605 = vadd.f32 %v504, 1.0
      %v606 = vadd.f32 %v506, 1.0
      %v607 = vadd.f32 %v508, 1.0
      %v608 = vadd.f32 %v510, 1.0
      %v609 = vadd.f32 %v512, 1.0
      %v610 = vadd.f32 %v514, 1.0
      %v611 = vrcp.pop %v579
      %v612 = vmul.f32 %v547, %v611
      %v613 = vrcp.pop %v580
      %v614 = vmul.f32 %v548, %v613
      %v615 = vrcp.pop %v581
      %v616 = vmul.f32 %v549, %v615
      %v617 = vrcp.pop %v582
      %v618 = vmul.f32 %v550, %v617
      %v619 = vrcp.pop %v583
      %v620 = vmul.f32 %v551, %v619
      %v621 = vrcp.pop %v584
      %v622 = vmul.f32 %v552, %v621
      %v623 = vrcp.pop %v585
      %v624 = vmul.f32 %v553, %v623
      %v625 = vrcp.pop %v586
      %v626 = vmul.f32 %v554, %v625
      %v627 = vrcp.pop %v587
      %v628 = vmul.f32 %v555, %v627
      %v629 = vrcp.pop %v588
      %v630 = vmul.f32 %v556, %v629
      %v631 = vrcp.pop %v589
      %v632 = vmul.f32 %v557, %v631
      %v633 = vrcp.pop %v590
      %v634 = vmul.f32 %v558, %v633
      %v635 = vrcp.pop %v591
      %v636 = vmul.f32 %v559, %v635
      %v637 = vrcp.pop %v592
      %v638 = vmul.f32 %v560, %v637
      %v639 = vrcp.pop %v593
      %v640 = vmul.f32 %v561, %v639
      %v641 = vrcp.pop %v594
      %v642 = vmul.f32 %v562, %v641
      %v643 = vrcp.pop %v595
      %v644 = vmul.f32 %v563, %v643
      %v645 = vrcp.pop %v596
      %v646 = vmul.f32 %v564, %v645
      %v647 = vrcp.pop %v597
      %v648 = vmul.f32 %v565, %v647
      %v649 = vrcp.pop %v598
      %v650 = vmul.f32 %v566, %v649
      %v651 = vrcp.pop %v599
      %v652 = vmul.f32 %v567, %v651
      %v653 = vrcp.pop %v600
      %v654 = vmul.f32 %v568, %v653
      %v655 = vrcp.pop %v601
      %v656 = vmul.f32 %v569, %v655
      %v657 = vrcp.pop %v602
      %v658 = vmul.f32 %v570, %v657
      %v659 = vrcp.pop %v603
      %v660 = vmul.f32 %v571, %v659
      %v661 = vrcp.pop %v604
      %v662 = vmul.f32 %v572, %v661
      %v663 = vrcp.pop %v605
      %v664 = vmul.f32 %v573, %v663
      %v665 = vrcp.pop %v606
      %v666 = vmul.f32 %v574, %v665
      %v667 = vrcp.pop %v607
      %v668 = vmul.f32 %v575, %v667
      %v669 = vrcp.pop %v608
      %v670 = vmul.f32 %v576, %v669
      %v671 = vrcp.pop %v609
      %v672 = vmul.f32 %v577, %v671
      %v673 = vrcp.pop %v610
      %v674 = vmul.f32 %v578, %v673
      %707 = vset.pattern.permute.xlu0 0
      %708 = vperm.xlu0 %707, %v612
      %v709 = vpop.permute.xlu0 %708
      %710 = vset.pattern.permute.xlu0 0
      %711 = vperm.xlu0 %710, %v614
      %v712 = vpop.permute.xlu0 %711
      %713 = vset.pattern.permute.xlu0 0
      %714 = vperm.xlu0 %713, %v616
      %v715 = vpop.permute.xlu0 %714
      %716 = vset.pattern.permute.xlu0 0
      %717 = vperm.xlu0 %716, %v618
      %v718 = vpop.permute.xlu0 %717
      %719 = vset.pattern.permute.xlu0 0
      %720 = vperm.xlu0 %719, %v620
      %v721 = vpop.permute.xlu0 %720
      %722 = vset.pattern.permute.xlu0 0
      %723 = vperm.xlu0 %722, %v622
      %v724 = vpop.permute.xlu0 %723
      %725 = vset.pattern.permute.xlu0 0
      %726 = vperm.xlu0 %725, %v624
      %v727 = vpop.permute.xlu0 %726
      %728 = vset.pattern.permute.xlu0 0
      %729 = vperm.xlu0 %728, %v626
      %v730 = vpop.permute.xlu0 %729
      %731 = vset.pattern.permute.xlu0 0
      %732 = vperm.xlu0 %731, %v628
      %v733 = vpop.permute.xlu0 %732
      %734 = vset.pattern.permute.xlu0 0
      %735 = vperm.xlu0 %734, %v630
      %v736 = vpop.permute.xlu0 %735
      %737 = vset.pattern.permute.xlu0 0
      %738 = vperm.xlu0 %737, %v632
      %v739 = vpop.permute.xlu0 %738
      %740 = vset.pattern.permute.xlu0 0
      %741 = vperm.xlu0 %740, %v634
      %v742 = vpop.permute.xlu0 %741
      %743 = vset.pattern.permute.xlu0 0
      %744 = vperm.xlu0 %743, %v636
      %v745 = vpop.permute.xlu0 %744
      %746 = vset.pattern.permute.xlu0 0
      %747 = vperm.xlu0 %746, %v638
      %v748 = vpop.permute.xlu0 %747
      %749 = vset.pattern.permute.xlu0 0
      %750 = vperm.xlu0 %749, %v640
      %v751 = vpop.permute.xlu0 %750
      %752 = vset.pattern.permute.xlu0 0
      %753 = vperm.xlu0 %752, %v642
      %v754 = vpop.permute.xlu0 %753
      %755 = vset.pattern.permute.xlu0 0
      %756 = vperm.xlu0 %755, %v644
      %v757 = vpop.permute.xlu0 %756
      %758 = vset.pattern.permute.xlu0 0
      %759 = vperm.xlu0 %758, %v646
      %v760 = vpop.permute.xlu0 %759
      %761 = vset.pattern.permute.xlu0 0
      %762 = vperm.xlu0 %761, %v648
      %v763 = vpop.permute.xlu0 %762
      %764 = vset.pattern.permute.xlu0 0
      %765 = vperm.xlu0 %764, %v650
      %v766 = vpop.permute.xlu0 %765
      %767 = vset.pattern.permute.xlu0 0
      %768 = vperm.xlu0 %767, %v652
      %v769 = vpop.permute.xlu0 %768
      %770 = vset.pattern.permute.xlu0 0
      %771 = vperm.xlu0 %770, %v654
      %v772 = vpop.permute.xlu0 %771
      %773 = vset.pattern.permute.xlu0 0
      %774 = vperm.xlu0 %773, %v656
      %v775 = vpop.permute.xlu0 %774
      %776 = vset.pattern.permute.xlu0 0
      %777 = vperm.xlu0 %776, %v658
      %v778 = vpop.permute.xlu0 %777
      %779 = vset.pattern.permute.xlu0 0
      %780 = vperm.xlu0 %779, %v660
      %v781 = vpop.permute.xlu0 %780
      %782 = vset.pattern.permute.xlu0 0
      %783 = vperm.xlu0 %782, %v662
      %v784 = vpop.permute.xlu0 %783
      %785 = vset.pattern.permute.xlu0 0
      %786 = vperm.xlu0 %785, %v664
      %v787 = vpop.permute.xlu0 %786
      %788 = vset.pattern.permute.xlu0 0
      %789 = vperm.xlu0 %788, %v666
      %v790 = vpop.permute.xlu0 %789
      %791 = vset.pattern.permute.xlu0 0
      %792 = vperm.xlu0 %791, %v668
      %v793 = vpop.permute.xlu0 %792
      %794 = vset.pattern.permute.xlu0 0
      %795 = vperm.xlu0 %794, %v670
      %v796 = vpop.permute.xlu0 %795
      %797 = vset.pattern.permute.xlu0 0
      %798 = vperm.xlu0 %797, %v672
      %v799 = vpop.permute.xlu0 %798
      %800 = vset.pattern.permute.xlu0 0
      %801 = vperm.xlu0 %800, %v674
      %v802 = vpop.permute.xlu0 %801
      %v803 = vlaneseq
      %v804 = vand.u32 %v803, 127
      %v805 = vlaneseq
      %v806 = vshrl.u32 %v805, 7
      %v807 = vsub.s32 %v804, %v806
      %v808 = vrot.slane %v709, %v807
      %v809 = vadd.s32 %v804, 4294967288
      %v810 = vlaneseq
      %v811 = vshrl.u32 %v810, 7
      %v812 = vsub.s32 %v809, %v811
      %v813 = vrot.slane %v712, %v812
      %vm814 = vcmask 130112
      %v815 = vsel %vm814, %v813, %v808
      %v816 = vadd.s32 %v804, 4294967280
      %v817 = vlaneseq
      %v818 = vshrl.u32 %v817, 7
      %v819 = vsub.s32 %v816, %v818
      %v820 = vrot.slane %v715, %v819
      %vm821 = vcmask 195712
      %v822 = vsel %vm821, %v820, %v815
      %v823 = vadd.s32 %v804, 4294967272
      %v824 = vlaneseq
      %v825 = vshrl.u32 %v824, 7
      %v826 = vsub.s32 %v823, %v825
      %v827 = vrot.slane %v718, %v826
      %vm828 = vcmask 261312
      %v829 = vsel %vm828, %v827, %v822
      %v830 = vadd.s32 %v804, 4294967264
      %v831 = vlaneseq
      %v832 = vshrl.u32 %v831, 7
      %v833 = vsub.s32 %v830, %v832
      %v834 = vrot.slane %v721, %v833
      %vm835 = vcmask 326912
      %v836 = vsel %vm835, %v834, %v829
      %v837 = vadd.s32 %v804, 4294967256
      %v838 = vlaneseq
      %v839 = vshrl.u32 %v838, 7
      %v840 = vsub.s32 %v837, %v839
      %v841 = vrot.slane %v724, %v840
      %vm842 = vcmask 392512
      %v843 = vsel %vm842, %v841, %v836
      %v844 = vadd.s32 %v804, 4294967248
      %v845 = vlaneseq
      %v846 = vshrl.u32 %v845, 7
      %v847 = vsub.s32 %v844, %v846
      %v848 = vrot.slane %v727, %v847
      %vm849 = vcmask 458112
      %v850 = vsel %vm849, %v848, %v843
      %v851 = vadd.s32 %v804, 4294967240
      %v852 = vlaneseq
      %v853 = vshrl.u32 %v852, 7
      %v854 = vsub.s32 %v851, %v853
      %v855 = vrot.slane %v730, %v854
      %vm856 = vcmask 523712
      %v857 = vsel %vm856, %v855, %v850
      %v858 = vadd.s32 %v804, 4294967232
      %v859 = vlaneseq
      %v860 = vshrl.u32 %v859, 7
      %v861 = vsub.s32 %v858, %v860
      %v862 = vrot.slane %v733, %v861
      %vm863 = vcmask 589312
      %v864 = vsel %vm863, %v862, %v857
      %v865 = vadd.s32 %v804, 4294967224
      %v866 = vlaneseq
      %v867 = vshrl.u32 %v866, 7
      %v868 = vsub.s32 %v865, %v867
      %v869 = vrot.slane %v736, %v868
      %vm870 = vcmask 654912
      %v871 = vsel %vm870, %v869, %v864
      %v872 = vadd.s32 %v804, 4294967216
      %v873 = vlaneseq
      %v874 = vshrl.u32 %v873, 7
      %v875 = vsub.s32 %v872, %v874
      %v876 = vrot.slane %v739, %v875
      %vm877 = vcmask 720512
      %v878 = vsel %vm877, %v876, %v871
      %v879 = vadd.s32 %v804, 4294967208
      %v880 = vlaneseq
      %v881 = vshrl.u32 %v880, 7
      %v882 = vsub.s32 %v879, %v881
      %v883 = vrot.slane %v742, %v882
      %vm884 = vcmask 786112
      %v885 = vsel %vm884, %v883, %v878
      %v886 = vadd.s32 %v804, 4294967200
      %v887 = vlaneseq
      %v888 = vshrl.u32 %v887, 7
      %v889 = vsub.s32 %v886, %v888
      %v890 = vrot.slane %v745, %v889
      %vm891 = vcmask 851712
      %v892 = vsel %vm891, %v890, %v885
      %v893 = vadd.s32 %v804, 4294967192
      %v894 = vlaneseq
      %v895 = vshrl.u32 %v894, 7
      %v896 = vsub.s32 %v893, %v895
      %v897 = vrot.slane %v748, %v896
      %vm898 = vcmask 917312
      %v899 = vsel %vm898, %v897, %v892
      %v900 = vadd.s32 %v804, 4294967184
      %v901 = vlaneseq
      %v902 = vshrl.u32 %v901, 7
      %v903 = vsub.s32 %v900, %v902
      %v904 = vrot.slane %v751, %v903
      %vm905 = vcmask 982912
      %v906 = vsel %vm905, %v904, %v899
      %v907 = vadd.s32 %v804, 4294967176
      %v908 = vlaneseq
      %v909 = vshrl.u32 %v908, 7
      %v910 = vsub.s32 %v907, %v909
      %v911 = vrot.slane %v754, %v910
      %vm912 = vcmask 1048512
      %v913 = vsel %vm912, %v911, %v906
      %v914 = vlaneseq
      %v915 = vshrl.u32 %v914, 7
      %v916 = vsub.s32 %v804, %v915
      %v917 = vrot.slane %v757, %v916
      %v918 = vlaneseq
      %v919 = vshrl.u32 %v918, 7
      %v920 = vsub.s32 %v809, %v919
      %v921 = vrot.slane %v760, %v920
      %v922 = vsel %vm814, %v921, %v917
      %v923 = vlaneseq
      %v924 = vshrl.u32 %v923, 7
      %v925 = vsub.s32 %v816, %v924
      %v926 = vrot.slane %v763, %v925
      %v927 = vsel %vm821, %v926, %v922
      %v928 = vlaneseq
      %v929 = vshrl.u32 %v928, 7
      %v930 = vsub.s32 %v823, %v929
      %v931 = vrot.slane %v766, %v930
      %v932 = vsel %vm828, %v931, %v927
      %v933 = vlaneseq
      %v934 = vshrl.u32 %v933, 7
      %v935 = vsub.s32 %v830, %v934
      %v936 = vrot.slane %v769, %v935
      %v937 = vsel %vm835, %v936, %v932
      %v938 = vlaneseq
      %v939 = vshrl.u32 %v938, 7
      %v940 = vsub.s32 %v837, %v939
      %v941 = vrot.slane %v772, %v940
      %v942 = vsel %vm842, %v941, %v937
      %v943 = vlaneseq
      %v944 = vshrl.u32 %v943, 7
      %v945 = vsub.s32 %v844, %v944
      %v946 = vrot.slane %v775, %v945
      %v947 = vsel %vm849, %v946, %v942
      %v948 = vlaneseq
      %v949 = vshrl.u32 %v948, 7
      %v950 = vsub.s32 %v851, %v949
      %v951 = vrot.slane %v778, %v950
      %v952 = vsel %vm856, %v951, %v947
      %v953 = vlaneseq
      %v954 = vshrl.u32 %v953, 7
      %v955 = vsub.s32 %v858, %v954
      %v956 = vrot.slane %v781, %v955
      %v957 = vsel %vm863, %v956, %v952
      %v958 = vlaneseq
      %v959 = vshrl.u32 %v958, 7
      %v960 = vsub.s32 %v865, %v959
      %v961 = vrot.slane %v784, %v960
      %v962 = vsel %vm870, %v961, %v957
      %v963 = vlaneseq
      %v964 = vshrl.u32 %v963, 7
      %v965 = vsub.s32 %v872, %v964
      %v966 = vrot.slane %v787, %v965
      %v967 = vsel %vm877, %v966, %v962
      %v968 = vlaneseq
      %v969 = vshrl.u32 %v968, 7
      %v970 = vsub.s32 %v879, %v969
      %v971 = vrot.slane %v790, %v970
      %v972 = vsel %vm884, %v971, %v967
      %v973 = vlaneseq
      %v974 = vshrl.u32 %v973, 7
      %v975 = vsub.s32 %v886, %v974
      %v976 = vrot.slane %v793, %v975
      %v977 = vsel %vm891, %v976, %v972
      %v978 = vlaneseq
      %v979 = vshrl.u32 %v978, 7
      %v980 = vsub.s32 %v893, %v979
      %v981 = vrot.slane %v796, %v980
      %v982 = vsel %vm898, %v981, %v977
      %v983 = vlaneseq
      %v984 = vshrl.u32 %v983, 7
      %v985 = vsub.s32 %v900, %v984
      %v986 = vrot.slane %v799, %v985
      %v987 = vsel %vm905, %v986, %v982
      %v988 = vlaneseq
      %v989 = vshrl.u32 %v988, 7
      %v990 = vsub.s32 %v907, %v989
      %v991 = vrot.slane %v802, %v990
      %v992 = vsel %vm912, %v991, %v987
      %vm993 = vcmask 1041409
      %v994 = vsel %vm993, %v992, %v913
      %996 = vst [vmem:[#allocation4] sm:$0x3] %v994
    $region21: #{tpu_custom_call.1} parent=1 // pred_fallthru
      _
    // Predicated region
    $region22: #{tpu_custom_call.1} parent=1 // pred_check
      _
    $region23: #{tpu_custom_call.1} parent=1 // pred_check_branch
      %998 = sbr.rel (0) target = $region25
    $region24: #{tpu_custom_call.1} parent=1 // pred_region
      %s1000 = ssub.s32 32, 32
      %1001 = vsyncadd [#allocation5], %s1000
      %s1003 = sshll.u32 [#allocation4], 4
      %s1004 = int_to_ptr.vmem [resolvable:$true] %s1003
      %1006 = dma.vmem_to_hbm [thread:$0]  %s1004, 32, %s3, [#allocation5]
    $region25: #{tpu_custom_call.1} parent=1 // pred_fallthru
      _
    // Predicated region
    $region26: #{tpu_custom_call.1} parent=1 // pred_check
      _
    $region27: #{tpu_custom_call.1} parent=1 // pred_check_branch
      %1008 = sbr.rel (0) target = $region29
    $region28: #{tpu_custom_call.1} parent=1 // pred_region
      %1009 = dma.done [#allocation5], 32
    $region29: #{tpu_custom_call.1} parent=1 // pred_fallthru
      _
    %1010 = vsyncpa [#allocation5], 1

</llo_original>
